<compile_context>
chip_gen: v7x
topology: tpu7x:2x2x1
jax: 0.10.0
libtpu: 0.0.40
codegen_flags: <defaults>
</compile_context>

<pallas_src>
import functools
import math

import jax
import jax.numpy as jnp
from jax import lax
from jax.experimental import pallas as pl
from jax.experimental.pallas import tpu as pltpu


def _round_up(x, m):
    return (x + m - 1) // m * m


def _split_cosine_kernel(x_ref, w_ref, out_ref, *, nb_proxy, cpad):
    # x tile: [tb, in_f] ; w slab: [in_f, nb_proxy*cpad] (pre-normalized, column j = p*cpad + class)
    x = x_ref[...].astype(jnp.float32)
    sumsq = jnp.sum(x * x, axis=1, keepdims=True)
    # matches torch.nn.functional.normalize(p=2, eps=1e-12):  x / max(||x||, 1e-12)
    xn = x * lax.rsqrt(jnp.maximum(sumsq, 1e-24))

    # One wide MXU matmul (bf16 operands, f32 accumulation).
    z = jnp.dot(xn.astype(w_ref.dtype), w_ref[...],
                preferred_element_type=jnp.float32)          # [tb, P*cpad]

    if nb_proxy == 1:
        red = z
    else:
        # Proxy slices are 128-aligned lane slices (cpad % 128 == 0) -> no relayout copies.
        zs = [z[:, p * cpad:(p + 1) * cpad] for p in range(nb_proxy)]
        m = zs[0]
        for zp in zs[1:]:
            m = jnp.maximum(m, zp)
        den = jnp.zeros_like(m)
        num = jnp.zeros_like(m)
        for zp in zs:
            e = jnp.exp(zp - m)
            den = den + e
            num = num + e * zp
        # softmax-weighted sum over proxies; reciprocal on the EUP slot.
        red = num * pl.reciprocal(den, approx=True)

    out_ref[...] = red.astype(out_ref.dtype)


def split_cosine_linear(x, w1, w2, sigma, *, nb_proxy, tb=128,
                        compute_dtype=jnp.bfloat16):
    """Forward of SplitCosineLinear.

    x:  [B, in_features]
    w1: [out_features1 * nb_proxy, in_features]   (row = class*nb_proxy + proxy, as in the nn.Module)
    w2: [out_features2 * nb_proxy, in_features]
    Returns (out, {'old_scores': ..., 'new_scores': ...}).
    """
    B, in_f = x.shape
    P = nb_proxy
    c1 = w1.shape[0] // P
    c2 = w2.shape[0] // P
    C = c1 + c2
    cpad = _round_up(C, 128)

    # ---- grid-invariant weight prep (hoisted out of the kernel) -------------------------------
    # [C, P, in_f]: class-major rows of the torch weights -> (class, proxy) indexed
    w = jnp.concatenate(
        [w1.reshape(c1, P, in_f), w2.reshape(c2, P, in_f)], axis=0
    ).astype(jnp.float32)
    wn = w * lax.rsqrt(jnp.maximum(jnp.sum(w * w, axis=-1, keepdims=True), 1e-24))
    wn = jnp.pad(wn, ((0, cpad - C), (0, 0), (0, 0)))            # [cpad, P, in_f], zero pad classes
    # slab[k, p*cpad + c] = normalized weight of (class c, proxy p), feature k
    slab = wn.transpose(2, 1, 0).reshape(in_f, P * cpad).astype(compute_dtype)

    # ---- batch tiling (pad so no rows are dropped) ---------------------------------------------
    tb_eff = min(tb, _round_up(B, 8))
    b_pad = _round_up(B, tb_eff)
    xp = jnp.pad(x.astype(jnp.float32), ((0, b_pad - B), (0, 0)))

    kernel = functools.partial(_split_cosine_kernel, nb_proxy=P, cpad=cpad)
    red = pl.pallas_call(
        kernel,
        out_shape=jax.ShapeDtypeStruct((b_pad, cpad), jnp.float32),
        grid_spec=pltpu.PrefetchScalarGridSpec(
            num_scalar_prefetch=0,
            grid=(b_pad // tb_eff,),
            in_specs=[
                pl.BlockSpec((tb_eff, in_f), lambda i: (i, 0)),        # x tile
                pl.BlockSpec((in_f, P * cpad), lambda i: (0, 0)),      # fused, pre-normalized weights
            ],
            out_specs=pl.BlockSpec((tb_eff, cpad), lambda i: (i, 0)),  # single lane-dense output
        ),
        compiler_params=pltpu.CompilerParams(dimension_semantics=("parallel",)),
    )(xp, slab)

    red = red[:B, :C]                       # drop batch + class padding
    sigma_f = jnp.asarray(sigma, jnp.float32)
    out = sigma_f * red
    return out, {"old_scores": red[:, :c1], "new_scores": red[:, c1:]}


if __name__ == "__main__":
    B, IN, C1, C2, P = 8, 32, 6, 4, 2

    key = jax.random.PRNGKey(0)
    k1, k2, kx = jax.random.split(key, 3)

    # deterministic parameter init, mirroring CosineLinear.reset_parameters()
    stdv = 1.0 / math.sqrt(IN)
    w1 = jax.random.uniform(k1, (C1 * P, IN), jnp.float32, -stdv, stdv)
    w2 = jax.random.uniform(k2, (C2 * P, IN), jnp.float32, -stdv, stdv)
    sigma = 1.0                                   # SplitCosineLinear fills sigma with 1

    x = jax.random.normal(kx, (B, IN), jnp.float32)

    out, aux = split_cosine_linear(x, w1, w2, sigma, nb_proxy=P)
    jax.block_until_ready((out, aux))

    # pure-JAX f32 reference for verification (kernel matmul is bf16 -> relaxed tolerance)
    def _norm(a):
        return a / jnp.maximum(jnp.sqrt(jnp.sum(a * a, axis=1, keepdims=True)), 1e-12)

    def _reduce_ref(o, p):
        if p == 1:
            return o
        bs, cp = o.shape
        s = o.reshape(bs, cp // p, p)
        a = jax.nn.softmax(s, axis=-1)
        return (a * s).sum(-1)

    o1 = _norm(x) @ _norm(w1).T
    o2 = _norm(x) @ _norm(w2).T
    ref_out = sigma * _reduce_ref(jnp.concatenate([o1, o2], axis=1), P)
    ref_old = _reduce_ref(o1, P)
    ref_new = _reduce_ref(o2, P)

    assert out.shape == (B, C1 + C2)
    assert aux["old_scores"].shape == (B, C1)
    assert aux["new_scores"].shape == (B, C2)
    assert jnp.allclose(out, ref_out, atol=1e-2), "combined scores mismatch"
    assert jnp.allclose(aux["old_scores"], ref_old, atol=1e-2), "old_scores mismatch"
    assert jnp.allclose(aux["new_scores"], ref_new, atol=1e-2), "new_scores mismatch"
    print("KERNEL_OK")
</pallas_src>

<mosaic_0001>
module attributes {stable_mosaic.version = 11 : i64} {
  func.func @_split_cosine_kernel(%arg0: i32, %arg1: memref<8x32xf32, #tpu.memory_space<vmem>>, %arg2: memref<32x256xbf16, #tpu.memory_space<vmem>>, %arg3: memref<8x128xf32, #tpu.memory_space<vmem>>) attributes {dimension_semantics = [#tpu.dimension_semantics<parallel>], iteration_bounds = array<i64: 1>, scalar_prefetch = 0 : i64, scratch_operands = 0 : i64, tpu.core_type = #tpu.core_type<tc>, window_params = [{transform_indices = @transform_0, window_bounds = array<i64: 8, 32>}, {pipeline_mode = #tpu.pipeline_mode<synchronous>, transform_indices = @transform_1, window_bounds = array<i64: 32, 256>}, {transform_indices = @transform_2, window_bounds = array<i64: 8, 128>}]} {
    %c0 = arith.constant 0 : index
    %c0_0 = arith.constant 0 : index
    %0 = vector.load %arg1[%c0, %c0_0] : memref<8x32xf32, #tpu.memory_space<vmem>>, vector<8x32xf32>
    %1 = arith.mulf %0, %0 : vector<8x32xf32>
    %cst = arith.constant dense<0.000000e+00> : vector<8xf32>
    %2 = vector.multi_reduction <add>, %1, %cst [1] : vector<8x32xf32> to vector<8xf32>
    %3 = vector.shape_cast %2 : vector<8xf32> to vector<8x1xf32>
    %cst_1 = arith.constant 1.000000e-24 : f32
    %4 = vector.broadcast %cst_1 : f32 to vector<8x1xf32>
    %5 = arith.maximumf %3, %4 : vector<8x1xf32>
    %6 = math.rsqrt %5 : vector<8x1xf32>
    %7 = vector.broadcast %6 : vector<8x1xf32> to vector<8x32xf32>
    %8 = arith.mulf %0, %7 : vector<8x32xf32>
    %9 = arith.truncf %8 : vector<8x32xf32> to vector<8x32xbf16>
    %c0_2 = arith.constant 0 : index
    %c0_3 = arith.constant 0 : index
    %10 = vector.load %arg2[%c0_2, %c0_3] : memref<32x256xbf16, #tpu.memory_space<vmem>>, vector<32x256xbf16>
    %cst_4 = arith.constant dense<0.000000e+00> : vector<8x256xf32>
    %11 = tpu.matmul %9, %10, %cst_4 {dimension_numbers = #tpu.dot_dimension_numbers<[1], [0], [0], [1], [0, 0, 1, 1], [], []>} : vector<8x32xbf16>, vector<32x256xbf16>, vector<8x256xf32> -> vector<8x256xf32>
    %12 = vector.extract_strided_slice %11 {offsets = [0, 0], sizes = [8, 128], strides = [1, 1]} : vector<8x256xf32> to vector<8x128xf32>
    %13 = vector.extract_strided_slice %11 {offsets = [0, 128], sizes = [8, 128], strides = [1, 1]} : vector<8x256xf32> to vector<8x128xf32>
    %14 = arith.maximumf %12, %13 : vector<8x128xf32>
    %cst_5 = arith.constant 0.000000e+00 : f32
    %15 = vector.broadcast %cst_5 : f32 to vector<8x128xf32>
    %cst_6 = arith.constant 0.000000e+00 : f32
    %16 = vector.broadcast %cst_6 : f32 to vector<8x128xf32>
    %17 = arith.subf %12, %14 : vector<8x128xf32>
    %18 = math.exp %17 : vector<8x128xf32>
    %19 = arith.addf %15, %18 : vector<8x128xf32>
    %20 = arith.mulf %18, %12 : vector<8x128xf32>
    %21 = arith.addf %16, %20 : vector<8x128xf32>
    %22 = arith.subf %13, %14 : vector<8x128xf32>
    %23 = math.exp %22 : vector<8x128xf32>
    %24 = arith.addf %19, %23 : vector<8x128xf32>
    %25 = arith.mulf %23, %13 : vector<8x128xf32>
    %26 = arith.addf %21, %25 : vector<8x128xf32>
    %27 = tpu.reciprocal %24 {approx = true} : vector<8x128xf32> -> vector<8x128xf32>
    %28 = arith.mulf %26, %27 : vector<8x128xf32>
    %c0_7 = arith.constant 0 : index
    %c0_8 = arith.constant 0 : index
    %29 = vector.load %arg3[%c0_7, %c0_8] : memref<8x128xf32, #tpu.memory_space<vmem>>, vector<8x128xf32>
    tpu.vector_store %arg3[%c0_7, %c0_8], %28 {strides = array<i32>} : memref<8x128xf32, #tpu.memory_space<vmem>>, vector<8x128xf32>,
    return
  }
  func.func @transform_0(%arg0: i32) -> (i32, i32) {
    %c0_i32 = arith.constant 0 : i32
    %c0_i32_0 = arith.constant 0 : i32
    return %arg0, %c0_i32 : i32, i32
  }
  func.func @transform_1(%arg0: i32) -> (i32, i32) {
    %c0_i32 = arith.constant 0 : i32
    %c0_i32_0 = arith.constant 0 : i32
    %c0_i32_1 = arith.constant 0 : i32
    return %c0_i32, %c0_i32_0 : i32, i32
  }
  func.func @transform_2(%arg0: i32) -> (i32, i32) {
    %c0_i32 = arith.constant 0 : i32
    %c0_i32_0 = arith.constant 0 : i32
    return %arg0, %c0_i32 : i32, i32
  }
}

</mosaic_0001>

<llo_original>
// kernel: tpu_custom_call.1
$region0: #{tpu_custom_call.1}
  #allocation0 [shape = 'u32[]', space=smem, size = 0x4, offset = 0x4, fixed_abs, tag = 'smem constant byte address 0x4 - core index']
  #allocation1 [shape = 'u32[144,128]{1,0:T(1,128)}', space=vmem, size = 0x12000, scoped, tag = 'internal scratch']
  %s0 = inlined_call_operand.hbm [shape: f32[8,32], index: 0, kind: input, shape index: {}]
  %s1 = inlined_call_operand.hbm [shape: bf16[32,256], index: 1, kind: input, shape index: {}]
  %s2 = inlined_call_operand.hbm [shape: f32[8,128], index: 2, kind: output, shape index: {}]
  %s3 = sld [smem:[#allocation0]]
  $region26: #{tpu_custom_call.1} parent=0
    _
  %s5 = ssub.s32 1, %s3
  %s6 = scalar_select 0, %s5, %s3
  $region1: #{tpu_custom_call.1} parent=0
    #allocation2 [shape = 'u8[4096]{0}', space=vmem, size = 0x1000, scoped, tag = 'input window, operand 0, single buffered']
    #allocation3 [shape = 's32[1]{0}', space=sflag, size = 0x4, scoped, tag = 'scoped memory for tpu_custom_call.1']
    #allocation4 [shape = 's32[1]{0}', space=sflag, size = 0x4, scoped, tag = 'scoped memory for tpu_custom_call.1']
    #allocation5 [shape = 'u8[16384]{0}', space=vmem, size = 0x4000, scoped, tag = 'input window, operand 1, single buffered']
    #allocation6 [shape = 's32[1]{0}', space=sflag, size = 0x4, scoped, tag = 'scoped memory for tpu_custom_call.1']
    #allocation7 [shape = 'u8[4096]{0}', space=vmem, size = 0x1000, scoped, tag = 'output window, operand 0, single buffered']
    %7 = vsyncpa [#allocation3], 0
    %8 = vsyncpa [#allocation6], 0
    %9 = vsyncpa [#allocation4], 0
    // Predicated region
    $region2: #{tpu_custom_call.1} parent=1 // pred_check
      _
    $region3: #{tpu_custom_call.1} parent=1 // pred_check_branch
      %11 = sbr.rel (0) target = $region5
    $region4: #{tpu_custom_call.1} parent=1 // pred_region
      %s13 = ssub.s32 128, 128
      %14 = vsyncadd [#allocation3], %s13
      %s16 = sshll.u32 [#allocation2], 4
      %s17 = int_to_ptr.vmem [resolvable:$true] %s16
      %19 = dma.hbm_to_vmem [thread:$0]  %s0, 128, %s17, [#allocation3]
    $region5: #{tpu_custom_call.1} parent=1 // pred_fallthru
      _
    // Predicated region
    $region6: #{tpu_custom_call.1} parent=1 // pred_check
      _
    $region7: #{tpu_custom_call.1} parent=1 // pred_check_branch
      %21 = sbr.rel (0) target = $region9
    $region8: #{tpu_custom_call.1} parent=1 // pred_region
      %s23 = ssub.s32 512, 512
      %24 = vsyncadd [#allocation6], %s23
      %s25 = sshll.u32 [#allocation5], 4
      %s26 = int_to_ptr.vmem [resolvable:$true] %s25
      %31 = dma.hbm_to_vmem [thread:$0]  %s1, 512, %s26, [#allocation6], 128, 128, 8
    $region9: #{tpu_custom_call.1} parent=1 // pred_fallthru
      _
    // Predicated region
    $region10: #{tpu_custom_call.1} parent=1 // pred_check
      _
    $region11: #{tpu_custom_call.1} parent=1 // pred_check_branch
      %33 = sbr.rel (0) target = $region13
    $region12: #{tpu_custom_call.1} parent=1 // pred_region
      %34 = dma.done [#allocation3], 128
    $region13: #{tpu_custom_call.1} parent=1 // pred_fallthru
      _
    // Predicated region
    $region14: #{tpu_custom_call.1} parent=1 // pred_check
      _
    $region15: #{tpu_custom_call.1} parent=1 // pred_check_branch
      %36 = sbr.rel (0) target = $region17
    $region16: #{tpu_custom_call.1} parent=1 // pred_region
      %37 = dma.done [#allocation6], 512
    $region17: #{tpu_custom_call.1} parent=1 // pred_fallthru
      _
    %v39 = vld [vmem:[#allocation2] sm:$0xff]
    %v40 = vmul.f32 %v39, %v39
    %vm41 = vcmask 261120
    %v42 = vsel %vm41, %v40, 0.0
    %43 = vadd.xlane.f32.xlu0 %v42
    %v44 = vpop.xlane.xlu0 %43
    %v45 = vmax.f32 %v44, 1e-24
    %v46 = vrsqrt.pop %v45
    %v47 = vmul.f32 %v39, %v46
    %v48 = vpack.c.bf16 %v47, %v47
    %v49 = vld [vmem:[#allocation5] sm:$0xff]
    %v50 = vld [vmem:[#allocation5 + $0x8] sm:$0xff]
    %v51 = vld [vmem:[#allocation5 + $0x10] sm:$0xff]
    %v52 = vld [vmem:[#allocation5 + $0x18] sm:$0xff]
    %v57 = vunpack.c.l.b16 %v49
    %v58 = vunpack.c.h.b16 %v49
    %v59 = vunpack.c.l.b16 %v50
    %v60 = vunpack.c.h.b16 %v50
    %v61 = vunpack.c.l.b16 %v51
    %v62 = vunpack.c.h.b16 %v51
    %v63 = vunpack.c.l.b16 %v52
    %v64 = vunpack.c.h.b16 %v52
    %v65 = vpack.c.b16 %v59, %v57
    %v66 = vpack.c.b16 %v60, %v58
    %v67 = vpack.c.b16 %v63, %v61
    %v68 = vpack.c.b16 %v64, %v62
    %v74 = vsel %vm41, %v48, 0
    %76 = vmatprep.subr.bf16.mxu0 %v66
    %77 = vmatpush1.bf16.msra.mxu0 %v65
    %78 = vmatprep.subr.bf16.mxu0 %v68
    %79 = vmatpush1.bf16.msra.mxu0 %v67
    %80 = vmatprep.subr.bf16.mxu0 0
    %81 = vmatpush1.bf16.msra.mxu0 0
    %82 = vmatprep.subr.bf16.mxu0 0
    %83 = vmatpush1.bf16.msra.mxu0 0
    %84 = vmatprep.subr.bf16.mxu0 0
    %85 = vmatpush1.bf16.msra.mxu0 0
    %86 = vmatprep.subr.bf16.mxu0 0
    %87 = vmatpush1.bf16.msra.mxu0 0
    %88 = vmatprep.subr.bf16.mxu0 0
    %89 = vmatpush1.bf16.msra.mxu0 0
    %90 = vmatprep.subr.bf16.mxu0 0
    %91 = vmatpush1.bf16.msra.mxu0 0
    %92 = vmatprep.subr.bf16.mxu0 0
    %93 = vmatpush1.bf16.msra.mxu0 0
    %94 = vmatprep.subr.bf16.mxu0 0
    %95 = vmatpush1.bf16.msra.mxu0 0
    %96 = vmatprep.subr.bf16.mxu0 0
    %97 = vmatpush1.bf16.msra.mxu0 0
    %98 = vmatprep.subr.bf16.mxu0 0
    %99 = vmatpush1.bf16.msra.mxu0 0
    %100 = vmatprep.subr.bf16.mxu0 0
    %101 = vmatpush1.bf16.msra.mxu0 0
    %102 = vmatprep.subr.bf16.mxu0 0
    %103 = vmatpush1.bf16.msra.mxu0 0
    %104 = vmatprep.subr.bf16.mxu0 0
    %105 = vmatpush1.bf16.msra.mxu0 0
    %106 = vmatprep.subr.bf16.mxu0 0
    %107 = vmatpush1.bf16.msra.mxu0 0
    %108 = vmatprep.mubr.bf16.mxu0 0
    %109 = vmatmul.mubr.bf16.gmra.mrb[0].mxu0 %v74
    %v110 = vpop.f32.mrb[0].mxu0
    %v111 = vadd.f32 0.0, %v110
    %v112 = vpop.f32.mrb[0].mxu0
    %v113 = vadd.f32 0.0, %v112
    %v114 = vpop.f32.mrb[0].mxu0
    %v115 = vpop.f32.mrb[0].mxu0
    %116 = vdwg.mxu0
    %v117 = vmax.f32 %v111, %v113
    %v118 = vsub.f32 %v111, %v117
    %v119 = vmul.f32 %v118, 1.442695
    %v120 = vpow.pop %v119
    %v121 = vadd.f32 %v120, 0.0
    %v122 = vmul.f32 %v120, %v111
    %v123 = vadd.f32 %v122, 0.0
    %v124 = vsub.f32 %v113, %v117
    %v125 = vmul.f32 %v124, 1.442695
    %v126 = vpow.pop %v125
    %v127 = vadd.f32 %v121, %v126
    %v128 = vmul.f32 %v126, %v113
    %v129 = vadd.f32 %v123, %v128
    %v130 = vrcp.pop %v127
    %v131 = vmul.f32 %v129, %v130
    %132 = vst [vmem:[#allocation7] sm:$0xff] %v131
    // Predicated region
    $region18: #{tpu_custom_call.1} parent=1 // pred_check
      _
    $region19: #{tpu_custom_call.1} parent=1 // pred_check_branch
      %134 = sbr.rel (0) target = $region21
    $region20: #{tpu_custom_call.1} parent=1 // pred_region
      %s136 = ssub.s32 128, 128
      %137 = vsyncadd [#allocation4], %s136
      %s139 = sshll.u32 [#allocation7], 4
      %s140 = int_to_ptr.vmem [resolvable:$true] %s139
      %142 = dma.vmem_to_hbm [thread:$0]  %s140, 128, %s2, [#allocation4]
    $region21: #{tpu_custom_call.1} parent=1 // pred_fallthru
      _
    // Predicated region
    $region22: #{tpu_custom_call.1} parent=1 // pred_check
      _
    $region23: #{tpu_custom_call.1} parent=1 // pred_check_branch
      %144 = sbr.rel (0) target = $region25
    $region24: #{tpu_custom_call.1} parent=1 // pred_region
      %145 = dma.done [#allocation4], 128
    $region25: #{tpu_custom_call.1} parent=1 // pred_fallthru
      _
    %146 = vsyncpa [#allocation3], 1
    %147 = vsyncpa [#allocation6], 1
    %148 = vsyncpa [#allocation4], 1

</llo_original>
